<compile_context>
chip_gen: v5e
topology: v5e:2x2
jax: 0.10.0
libtpu: 0.0.40
codegen_flags: <defaults>
</compile_context>

<pallas_src>
import jax
import jax.numpy as jnp
from jax.experimental import pallas as pl
from jax.experimental.pallas import tpu as pltpu


_VMEM = pl.BlockSpec(memory_space=pltpu.MemorySpace.VMEM)  # whole array in VMEM


# --------------------------------------------------------------------------
# Kernel 1: nconv == einsum('ncvl,vw->ncwl') as one matmul
#   y[m, w] = sum_v x[m, v] * adp[v, w],   m = flattened (c, n, l)
# --------------------------------------------------------------------------
def _nconv_kernel(x_ref, a_ref, o_ref):
    x = x_ref[...]                        # (M, Vin),  M = C*N*L
    a = a_ref[...]                        # (Vin, W)
    if x.shape[1] == 1:
        # out-region case (single source node): outer product on the VPU,
        # (M,1) * (1,W) -> (M,W); avoids a contraction-dim-1 MXU matmul.
        o_ref[...] = x * a
    else:
        o_ref[...] = jnp.dot(x, a, preferred_element_type=jnp.float32)


# --------------------------------------------------------------------------
# Kernel 2: 1x1 Conv2d over channels (+ bias) as one matmul
#   o[co, m] = sum_ci W[co, ci] * y[ci, m] + b[co],   m = flattened (n, l, w)
# --------------------------------------------------------------------------
def _conv1x1_kernel(w_ref, b_ref, y_ref, o_ref):
    o_ref[...] = (
        jnp.dot(w_ref[...], y_ref[...], preferred_element_type=jnp.float32)
        + b_ref[...]
    )


def out_region_conv_forward(x, adp, weight, bias, dropout=0.0, training=False):
    """OutRegionConv.forward: nconv -> final_conv (1x1) -> dropout (eval=identity).

    x: (N, c_out, V, L); adp: (V, W); weight: (c_in, c_out, 1, 1); bias: (c_in,)
    returns (N, c_in, W, L)
    """
    N, C, V, L = x.shape
    W = adp.shape[1]
    Cout = weight.shape[0]
    M = C * N * L

    # ---- nconv: contraction axis V goes to the lane edge, C stays outermost
    x_flat = jnp.transpose(x, (1, 0, 3, 2)).reshape(M, V).astype(jnp.float32)
    y = pl.pallas_call(
        _nconv_kernel,
        out_shape=jax.ShapeDtypeStruct((M, W), jnp.float32),
        in_specs=[_VMEM, _VMEM],
        out_specs=_VMEM,
    )(x_flat, adp.astype(jnp.float32))                    # (C*N*L, W)

    # Contiguous reshape (no data movement): C becomes the contraction axis
    y2 = y.reshape(C, N * L * W)                          # (Cin, N*L*W)

    # ---- 1x1 conv over channels (+ bias), lane-dense output
    wmat = weight.reshape(Cout, C).astype(jnp.float32)
    z = pl.pallas_call(
        _conv1x1_kernel,
        out_shape=jax.ShapeDtypeStruct((Cout, N * L * W), jnp.float32),
        in_specs=[_VMEM, _VMEM, _VMEM],
        out_specs=_VMEM,
    )(wmat, bias.reshape(Cout, 1).astype(jnp.float32), y2)

    h = jnp.transpose(z.reshape(Cout, N, L, W), (1, 0, 3, 2))   # (N, Cout, W, L)

    # F.dropout with training=False is the identity (inference port).
    # TODO(synk): training-mode dropout would need pltpu.prng_seed/prng_random_bits
    if training and dropout > 0.0:
        raise NotImplementedError("inference-only port: dropout is identity")
    return h


# --------------------------------------------------------------------------
# Demo + self-check
# --------------------------------------------------------------------------
def _reference(x, adp, weight, bias):
    Cout = weight.shape[0]
    out = jnp.einsum('ncvl,vw->ncwl', x, adp)
    h = jnp.einsum('oc,ncwl->nowl', weight.reshape(Cout, -1), out)
    return h + bias[None, :, None, None]


if __name__ == "__main__":
    key = jax.random.PRNGKey(0)
    k = jax.random.split(key, 8)

    # Module: OutRegionConv(c_in=16, c_out=32, dropout=0.3); x has c_out channels.
    N, C_x, C_out_ch, V, W, L = 2, 32, 16, 16, 16, 8
    x = jax.random.normal(k[0], (N, C_x, V, L), dtype=jnp.float32)
    adp = 0.1 * jax.random.normal(k[1], (V, W), dtype=jnp.float32)
    weight = 0.1 * jax.random.normal(k[2], (C_out_ch, C_x, 1, 1), dtype=jnp.float32)
    bias = 0.1 * jax.random.normal(k[3], (C_out_ch,), dtype=jnp.float32)

    fwd = jax.jit(out_region_conv_forward)
    h = fwd(x, adp, weight, bias)
    jax.block_until_ready(h)
    assert h.shape == (N, C_out_ch, W, L)

    ref = _reference(x, adp, weight, bias)
    rel = float(jnp.max(jnp.abs(h - ref)) / (jnp.max(jnp.abs(ref)) + 1e-6))
    assert rel < 1e-2, f"mismatch vs reference: rel err {rel}"

    # Out-region usage: single source node, adjacency (1, W).
    x1 = jax.random.normal(k[4], (N, C_x, 1, L), dtype=jnp.float32)
    adp1 = 0.1 * jax.random.normal(k[5], (1, W), dtype=jnp.float32)
    h1 = jax.jit(out_region_conv_forward)(x1, adp1, weight, bias)
    jax.block_until_ready(h1)
    assert h1.shape == (N, C_out_ch, W, L)

    ref1 = _reference(x1, adp1, weight, bias)
    rel1 = float(jnp.max(jnp.abs(h1 - ref1)) / (jnp.max(jnp.abs(ref1)) + 1e-6))
    assert rel1 < 1e-2, f"mismatch (Vin=1 out-region case): rel err {rel1}"

    print("KERNEL_OK")
</pallas_src>

<mosaic_0001>
module attributes {stable_mosaic.version = 11 : i64} {
  func.func @_conv1x1_kernel(%arg0: memref<16x32xf32, #tpu.memory_space<vmem>>, %arg1: memref<16x1xf32, #tpu.memory_space<vmem>>, %arg2: memref<32x256xf32, #tpu.memory_space<vmem>>, %arg3: memref<16x256xf32, #tpu.memory_space<vmem>>) attributes {dimension_semantics = [], scalar_prefetch = 0 : i64, scratch_operands = 0 : i64, tpu.core_type = #tpu.core_type<tc>} {
    %c0 = arith.constant 0 : index
    %c0_0 = arith.constant 0 : index
    %0 = vector.load %arg0[%c0, %c0_0] : memref<16x32xf32, #tpu.memory_space<vmem>>, vector<16x32xf32>
    %c0_1 = arith.constant 0 : index
    %c0_2 = arith.constant 0 : index
    %1 = vector.load %arg2[%c0_1, %c0_2] : memref<32x256xf32, #tpu.memory_space<vmem>>, vector<32x256xf32>
    %cst = arith.constant dense<0.000000e+00> : vector<16x256xf32>
    %2 = tpu.matmul %0, %1, %cst {dimension_numbers = #tpu.dot_dimension_numbers<[1], [0], [0], [1], [0, 0, 1, 1], [], []>} : vector<16x32xf32>, vector<32x256xf32>, vector<16x256xf32> -> vector<16x256xf32>
    %c0_3 = arith.constant 0 : index
    %c0_4 = arith.constant 0 : index
    %3 = vector.load %arg1[%c0_3, %c0_4] : memref<16x1xf32, #tpu.memory_space<vmem>>, vector<16x1xf32>
    %4 = vector.broadcast %3 : vector<16x1xf32> to vector<16x256xf32>
    %5 = arith.addf %2, %4 : vector<16x256xf32>
    %c0_5 = arith.constant 0 : index
    %c0_6 = arith.constant 0 : index
    %6 = vector.load %arg3[%c0_5, %c0_6] : memref<16x256xf32, #tpu.memory_space<vmem>>, vector<16x256xf32>
    tpu.vector_store %arg3[%c0_5, %c0_6], %5 {strides = array<i32>} : memref<16x256xf32, #tpu.memory_space<vmem>>, vector<16x256xf32>,
    return
  }
}

module attributes {stable_mosaic.version = 11 : i64} {
  func.func @_nconv_kernel(%arg0: memref<512x16xf32, #tpu.memory_space<vmem>>, %arg1: memref<16x16xf32, #tpu.memory_space<vmem>>, %arg2: memref<512x16xf32, #tpu.memory_space<vmem>>) attributes {dimension_semantics = [], scalar_prefetch = 0 : i64, scratch_operands = 0 : i64, tpu.core_type = #tpu.core_type<tc>} {
    %c0 = arith.constant 0 : index
    %c0_0 = arith.constant 0 : index
    %0 = vector.load %arg0[%c0, %c0_0] : memref<512x16xf32, #tpu.memory_space<vmem>>, vector<512x16xf32>
    %c0_1 = arith.constant 0 : index
    %c0_2 = arith.constant 0 : index
    %1 = vector.load %arg1[%c0_1, %c0_2] : memref<16x16xf32, #tpu.memory_space<vmem>>, vector<16x16xf32>
    %cst = arith.constant dense<0.000000e+00> : vector<512x16xf32>
    %2 = tpu.matmul %0, %1, %cst {dimension_numbers = #tpu.dot_dimension_numbers<[1], [0], [0], [1], [0, 0, 1, 1], [], []>} : vector<512x16xf32>, vector<16x16xf32>, vector<512x16xf32> -> vector<512x16xf32>
    %c0_3 = arith.constant 0 : index
    %c0_4 = arith.constant 0 : index
    %3 = vector.load %arg2[%c0_3, %c0_4] : memref<512x16xf32, #tpu.memory_space<vmem>>, vector<512x16xf32>
    tpu.vector_store %arg2[%c0_3, %c0_4], %2 {strides = array<i32>} : memref<512x16xf32, #tpu.memory_space<vmem>>, vector<512x16xf32>,
    return
  }
}

</mosaic_0001>

<llo_original>
// kernel: out_region_conv_forward.3
$region0: #{out_region_conv_forward.3}
  #allocation0 [shape = 'u32[]', space=smem, size = 0x4, offset = 0x4, fixed_abs, tag = 'smem constant byte address 0x4 - core index']
  #allocation1 [shape = 'u32[72,128]{1,0:T(1,128)}', space=vmem, size = 0x9000, scoped, tag = 'internal scratch']
  %s0 = inlined_call_operand.vmem [shape: f32[16,32], index: 0, kind: input, shape index: {}]
  %s1 = inlined_call_operand.vmem [shape: f32[16,1], index: 1, kind: input, shape index: {}]
  %s2 = inlined_call_operand.vmem [shape: f32[32,256], index: 2, kind: input, shape index: {}]
  %s3 = inlined_call_operand.vmem [shape: f32[16,256], index: 3, kind: output, shape index: {}]
  %s4 = sld [smem:[#allocation0]]
  $region22: #{out_region_conv_forward.3} parent=0
    _
  %s6 = ssub.s32 1, %s4
  %s7 = scalar_select 0, %s6, %s4
  // Predicated region
  $region2: #{out_region_conv_forward.3} parent=0 // pred_check
    _
  $region3: #{out_region_conv_forward.3} parent=0 // pred_check_branch
    %9 = sbr.rel (0) target = $region5
  $region4: #{out_region_conv_forward.3} parent=0 // pred_region
    _
  $region5: #{out_region_conv_forward.3} parent=0 // pred_fallthru
    _
  // Predicated region
  $region6: #{out_region_conv_forward.3} parent=0 // pred_check
    _
  $region7: #{out_region_conv_forward.3} parent=0 // pred_check_branch
    %11 = sbr.rel (0) target = $region9
  $region8: #{out_region_conv_forward.3} parent=0 // pred_region
    _
  $region9: #{out_region_conv_forward.3} parent=0 // pred_fallthru
    _
  // Predicated region
  $region10: #{out_region_conv_forward.3} parent=0 // pred_check
    _
  $region11: #{out_region_conv_forward.3} parent=0 // pred_check_branch
    %13 = sbr.rel (0) target = $region13
  $region12: #{out_region_conv_forward.3} parent=0 // pred_region
    _
  $region13: #{out_region_conv_forward.3} parent=0 // pred_fallthru
    _
  %v14 = vld [vmem:[%s0] sm:$0xff]
  %v15 = vld [vmem:[%s0 + $0x8] sm:$0xff]
  %v16 = vld [vmem:[%s2] sm:$0xff]
  %v17 = vld [vmem:[%s2 + $0x8] sm:$0xff]
  %v18 = vld [vmem:[%s2 + $0x10] sm:$0xff]
  %v19 = vld [vmem:[%s2 + $0x18] sm:$0xff]
  %v20 = vld [vmem:[%s2 + $0x20] sm:$0xff]
  %v21 = vld [vmem:[%s2 + $0x28] sm:$0xff]
  %v22 = vld [vmem:[%s2 + $0x30] sm:$0xff]
  %v23 = vld [vmem:[%s2 + $0x38] sm:$0xff]
  %v24 = vld [vmem:[%s1] sm:$0xff]
  %v25 = vld [vmem:[%s1 + $0x8] sm:$0xff]
  %27 = vset.pattern.permute.xlu0 0
  %28 = vperm.xlu0 %27, %v24
  %v29 = vpop.permute.xlu0 %28
  %32 = vset.pattern.permute.xlu0 0
  %33 = vperm.xlu0 %32, %v25
  %v34 = vpop.permute.xlu0 %33
  %vm36 = vcmask 261120
  %v38 = vsel %vm36, %v14, 0
  %v41 = vsel %vm36, %v15, 0
  %43 = vmatpush.msra.mxu0 0.0
  %44 = vmatpush.msra.mxu0 0.0
  %45 = vmatpush.msra.mxu0 0.0
  %46 = vmatpush.msra.mxu0 0.0
  %47 = vmatpush.msra.mxu0 0.0
  %48 = vmatpush.msra.mxu0 0.0
  %49 = vmatpush.msra.mxu0 0.0
  %50 = vmatpush.msra.mxu0 0.0
  %51 = vmatpush.msra.mxu0 0.0
  %52 = vmatpush.msra.mxu0 0.0
  %53 = vmatpush.msra.mxu0 0.0
  %54 = vmatpush.msra.mxu0 0.0
  %55 = vmatpush.msra.mxu0 %v22
  %56 = vmatpush.msra.mxu0 %v20
  %57 = vmatpush.msra.mxu0 %v18
  %58 = vmatpush.msra.mxu0 %v16
  %59 = vmatmul.f32.gmra.mxu0 %v38
  %v60 = vpop.f32.mrf.mxu0
  %v61 = vadd.f32 %v29, %v60
  %62 = vmatmul.f32.gmra.mxu0 %v41
  %v63 = vpop.f32.mrf.mxu0
  %v64 = vadd.f32 %v34, %v63
  %65 = vdwg.mxu0
  %66 = vmatpush.msra.mxu0 0.0
  %67 = vmatpush.msra.mxu0 0.0
  %68 = vmatpush.msra.mxu0 0.0
  %69 = vmatpush.msra.mxu0 0.0
  %70 = vmatpush.msra.mxu0 0.0
  %71 = vmatpush.msra.mxu0 0.0
  %72 = vmatpush.msra.mxu0 0.0
  %73 = vmatpush.msra.mxu0 0.0
  %74 = vmatpush.msra.mxu0 0.0
  %75 = vmatpush.msra.mxu0 0.0
  %76 = vmatpush.msra.mxu0 0.0
  %77 = vmatpush.msra.mxu0 0.0
  %78 = vmatpush.msra.mxu0 %v23
  %79 = vmatpush.msra.mxu0 %v21
  %80 = vmatpush.msra.mxu0 %v19
  %81 = vmatpush.msra.mxu0 %v17
  %82 = vmatmul.f32.gmra.mxu0 %v38
  %v83 = vpop.f32.mrf.mxu0
  %v84 = vadd.f32 %v29, %v83
  %85 = vmatmul.f32.gmra.mxu0 %v41
  %v86 = vpop.f32.mrf.mxu0
  %v87 = vadd.f32 %v34, %v86
  %88 = vdwg.mxu0
  %89 = vst [vmem:[%s3] sm:$0xff] %v61
  %90 = vst [vmem:[%s3 + $0x8] sm:$0xff] %v84
  %91 = vst [vmem:[%s3 + $0x10] sm:$0xff] %v64
  %92 = vst [vmem:[%s3 + $0x18] sm:$0xff] %v87
  // Predicated region
  $region14: #{out_region_conv_forward.3} parent=0 // pred_check
    _
  $region15: #{out_region_conv_forward.3} parent=0 // pred_check_branch
    %94 = sbr.rel (0) target = $region17
  $region16: #{out_region_conv_forward.3} parent=0 // pred_region
    _
  $region17: #{out_region_conv_forward.3} parent=0 // pred_fallthru
    _
  // Predicated region
  $region18: #{out_region_conv_forward.3} parent=0 // pred_check
    _
  $region19: #{out_region_conv_forward.3} parent=0 // pred_check_branch
    %96 = sbr.rel (0) target = $region21
  $region20: #{out_region_conv_forward.3} parent=0 // pred_region
    _
  $region21: #{out_region_conv_forward.3} parent=0 // pred_fallthru
    _

// kernel: out_region_conv_forward.2
$region0: #{out_region_conv_forward.2}
  #allocation0 [shape = 'u32[]', space=smem, size = 0x4, offset = 0x4, fixed_abs, tag = 'smem constant byte address 0x4 - core index']
  #allocation1 [shape = 'u32[72,128]{1,0:T(1,128)}', space=vmem, size = 0x9000, scoped, tag = 'internal scratch']
  %s0 = inlined_call_operand.vmem [shape: f32[512,16], index: 0, kind: input, shape index: {}]
  %s1 = inlined_call_operand.vmem [shape: f32[16,16], index: 1, kind: input, shape index: {}]
  %s2 = inlined_call_operand.vmem [shape: f32[512,16], index: 2, kind: output, shape index: {}]
  %s3 = sld [smem:[#allocation0]]
  $region18: #{out_region_conv_forward.2} parent=0
    _
  %s5 = ssub.s32 1, %s3
  %s6 = scalar_select 0, %s5, %s3
  // Predicated region
  $region2: #{out_region_conv_forward.2} parent=0 // pred_check
    _
  $region3: #{out_region_conv_forward.2} parent=0 // pred_check_branch
    %8 = sbr.rel (0) target = $region5
  $region4: #{out_region_conv_forward.2} parent=0 // pred_region
    _
  $region5: #{out_region_conv_forward.2} parent=0 // pred_fallthru
    _
  // Predicated region
  $region6: #{out_region_conv_forward.2} parent=0 // pred_check
    _
  $region7: #{out_region_conv_forward.2} parent=0 // pred_check_branch
    %10 = sbr.rel (0) target = $region9
  $region8: #{out_region_conv_forward.2} parent=0 // pred_region
    _
  $region9: #{out_region_conv_forward.2} parent=0 // pred_fallthru
    _
  %v11 = vld [vmem:[%s0] sm:$0xff]
  %v12 = vld [vmem:[%s0 + $0x8] sm:$0xff]
  %v13 = vld [vmem:[%s0 + $0x10] sm:$0xff]
  %v14 = vld [vmem:[%s0 + $0x18] sm:$0xff]
  %v15 = vld [vmem:[%s0 + $0x20] sm:$0xff]
  %v16 = vld [vmem:[%s0 + $0x28] sm:$0xff]
  %v17 = vld [vmem:[%s0 + $0x30] sm:$0xff]
  %v18 = vld [vmem:[%s0 + $0x38] sm:$0xff]
  %v19 = vld [vmem:[%s0 + $0x40] sm:$0xff]
  %v20 = vld [vmem:[%s0 + $0x48] sm:$0xff]
  %v21 = vld [vmem:[%s0 + $0x50] sm:$0xff]
  %v22 = vld [vmem:[%s0 + $0x58] sm:$0xff]
  %v23 = vld [vmem:[%s0 + $0x60] sm:$0xff]
  %v24 = vld [vmem:[%s0 + $0x68] sm:$0xff]
  %v25 = vld [vmem:[%s0 + $0x70] sm:$0xff]
  %v26 = vld [vmem:[%s0 + $0x78] sm:$0xff]
  %v27 = vld [vmem:[%s0 + $0x80] sm:$0xff]
  %v28 = vld [vmem:[%s0 + $0x88] sm:$0xff]
  %v29 = vld [vmem:[%s0 + $0x90] sm:$0xff]
  %v30 = vld [vmem:[%s0 + $0x98] sm:$0xff]
  %v31 = vld [vmem:[%s0 + $0xa0] sm:$0xff]
  %v32 = vld [vmem:[%s0 + $0xa8] sm:$0xff]
  %v33 = vld [vmem:[%s0 + $0xb0] sm:$0xff]
  %v34 = vld [vmem:[%s0 + $0xb8] sm:$0xff]
  %v35 = vld [vmem:[%s0 + $0xc0] sm:$0xff]
  %v36 = vld [vmem:[%s0 + $0xc8] sm:$0xff]
  %v37 = vld [vmem:[%s0 + $0xd0] sm:$0xff]
  %v38 = vld [vmem:[%s0 + $0xd8] sm:$0xff]
  %v39 = vld [vmem:[%s0 + $0xe0] sm:$0xff]
  %v40 = vld [vmem:[%s0 + $0xe8] sm:$0xff]
  %v41 = vld [vmem:[%s0 + $0xf0] sm:$0xff]
  %v42 = vld [vmem:[%s0 + $0xf8] sm:$0xff]
  %v43 = vld [vmem:[%s0 + $0x100] sm:$0xff]
  %v44 = vld [vmem:[%s0 + $0x108] sm:$0xff]
  %v45 = vld [vmem:[%s0 + $0x110] sm:$0xff]
  %v46 = vld [vmem:[%s0 + $0x118] sm:$0xff]
  %v47 = vld [vmem:[%s0 + $0x120] sm:$0xff]
  %v48 = vld [vmem:[%s0 + $0x128] sm:$0xff]
  %v49 = vld [vmem:[%s0 + $0x130] sm:$0xff]
  %v50 = vld [vmem:[%s0 + $0x138] sm:$0xff]
  %v51 = vld [vmem:[%s0 + $0x140] sm:$0xff]
  %v52 = vld [vmem:[%s0 + $0x148] sm:$0xff]
  %v53 = vld [vmem:[%s0 + $0x150] sm:$0xff]
  %v54 = vld [vmem:[%s0 + $0x158] sm:$0xff]
  %v55 = vld [vmem:[%s0 + $0x160] sm:$0xff]
  %v56 = vld [vmem:[%s0 + $0x168] sm:$0xff]
  %v57 = vld [vmem:[%s0 + $0x170] sm:$0xff]
  %v58 = vld [vmem:[%s0 + $0x178] sm:$0xff]
  %v59 = vld [vmem:[%s0 + $0x180] sm:$0xff]
  %v60 = vld [vmem:[%s0 + $0x188] sm:$0xff]
  %v61 = vld [vmem:[%s0 + $0x190] sm:$0xff]
  %v62 = vld [vmem:[%s0 + $0x198] sm:$0xff]
  %v63 = vld [vmem:[%s0 + $0x1a0] sm:$0xff]
  %v64 = vld [vmem:[%s0 + $0x1a8] sm:$0xff]
  %v65 = vld [vmem:[%s0 + $0x1b0] sm:$0xff]
  %v66 = vld [vmem:[%s0 + $0x1b8] sm:$0xff]
  %v67 = vld [vmem:[%s0 + $0x1c0] sm:$0xff]
  %v68 = vld [vmem:[%s0 + $0x1c8] sm:$0xff]
  %v69 = vld [vmem:[%s0 + $0x1d0] sm:$0xff]
  %v70 = vld [vmem:[%s0 + $0x1d8] sm:$0xff]
  %v71 = vld [vmem:[%s0 + $0x1e0] sm:$0xff]
  %v72 = vld [vmem:[%s0 + $0x1e8] sm:$0xff]
  %v73 = vld [vmem:[%s0 + $0x1f0] sm:$0xff]
  %v74 = vld [vmem:[%s0 + $0x1f8] sm:$0xff]
  %v75 = vld [vmem:[%s1] sm:$0xff]
  %v76 = vld [vmem:[%s1 + $0x8] sm:$0xff]
  %vm77 = vcmask 130048
  %v79 = vsel %vm77, %v11, 0
  %v82 = vsel %vm77, %v12, 0
  %v85 = vsel %vm77, %v13, 0
  %v88 = vsel %vm77, %v14, 0
  %v91 = vsel %vm77, %v15, 0
  %v94 = vsel %vm77, %v16, 0
  %v97 = vsel %vm77, %v17, 0
  %v100 = vsel %vm77, %v18, 0
  %v103 = vsel %vm77, %v19, 0
  %v106 = vsel %vm77, %v20, 0
  %v109 = vsel %vm77, %v21, 0
  %v112 = vsel %vm77, %v22, 0
  %v115 = vsel %vm77, %v23, 0
  %v118 = vsel %vm77, %v24, 0
  %v121 = vsel %vm77, %v25, 0
  %v124 = vsel %vm77, %v26, 0
  %v127 = vsel %vm77, %v27, 0
  %v130 = vsel %vm77, %v28, 0
  %v133 = vsel %vm77, %v29, 0
  %v136 = vsel %vm77, %v30, 0
  %v139 = vsel %vm77, %v31, 0
  %v142 = vsel %vm77, %v32, 0
  %v145 = vsel %vm77, %v33, 0
  %v148 = vsel %vm77, %v34, 0
  %v151 = vsel %vm77, %v35, 0
  %v154 = vsel %vm77, %v36, 0
  %v157 = vsel %vm77, %v37, 0
  %v160 = vsel %vm77, %v38, 0
  %v163 = vsel %vm77, %v39, 0
  %v166 = vsel %vm77, %v40, 0
  %v169 = vsel %vm77, %v41, 0
  %v172 = vsel %vm77, %v42, 0
  %v175 = vsel %vm77, %v43, 0
  %v178 = vsel %vm77, %v44, 0
  %v181 = vsel %vm77, %v45, 0
  %v184 = vsel %vm77, %v46, 0
  %v187 = vsel %vm77, %v47, 0
  %v190 = vsel %vm77, %v48, 0
  %v193 = vsel %vm77, %v49, 0
  %v196 = vsel %vm77, %v50, 0
  %v199 = vsel %vm77, %v51, 0
  %v202 = vsel %vm77, %v52, 0
  %v205 = vsel %vm77, %v53, 0
  %v208 = vsel %vm77, %v54, 0
  %v211 = vsel %vm77, %v55, 0
  %v214 = vsel %vm77, %v56, 0
  %v217 = vsel %vm77, %v57, 0
  %v220 = vsel %vm77, %v58, 0
  %v223 = vsel %vm77, %v59, 0
  %v226 = vsel %vm77, %v60, 0
  %v229 = vsel %vm77, %v61, 0
  %v232 = vsel %vm77, %v62, 0
  %v235 = vsel %vm77, %v63, 0
  %v238 = vsel %vm77, %v64, 0
  %v241 = vsel %vm77, %v65, 0
  %v244 = vsel %vm77, %v66, 0
  %v247 = vsel %vm77, %v67, 0
  %v250 = vsel %vm77, %v68, 0
  %v253 = vsel %vm77, %v69, 0
  %v256 = vsel %vm77, %v70, 0
  %v259 = vsel %vm77, %v71, 0
  %v262 = vsel %vm77, %v72, 0
  %v265 = vsel %vm77, %v73, 0
  %v268 = vsel %vm77, %v74, 0
  %270 = vmatpush.msra.mxu0 0.0
  %271 = vmatpush.msra.mxu0 0.0
  %272 = vmatpush.msra.mxu0 0.0
  %273 = vmatpush.msra.mxu0 0.0
  %274 = vmatpush.msra.mxu0 0.0
  %275 = vmatpush.msra.mxu0 0.0
  %276 = vmatpush.msra.mxu0 0.0
  %277 = vmatpush.msra.mxu0 0.0
  %278 = vmatpush.msra.mxu0 0.0
  %279 = vmatpush.msra.mxu0 0.0
  %280 = vmatpush.msra.mxu0 0.0
  %281 = vmatpush.msra.mxu0 0.0
  %282 = vmatpush.msra.mxu0 0.0
  %283 = vmatpush.msra.mxu0 0.0
  %284 = vmatpush.msra.mxu0 %v76
  %285 = vmatpush.msra.mxu0 %v75
  %286 = vmatmul.f32.gmra.mxu0 %v79
  %v287 = vpop.f32.mrf.mxu0
  %v288 = vadd.f32 0.0, %v287
  %289 = vmatmul.f32.gmra.mxu0 %v82
  %v290 = vpop.f32.mrf.mxu0
  %v291 = vadd.f32 0.0, %v290
  %292 = vmatmul.f32.gmra.mxu0 %v85
  %v293 = vpop.f32.mrf.mxu0
  %v294 = vadd.f32 0.0, %v293
  %295 = vmatmul.f32.gmra.mxu0 %v88
  %v296 = vpop.f32.mrf.mxu0
  %v297 = vadd.f32 0.0, %v296
  %298 = vmatmul.f32.gmra.mxu0 %v91
  %v299 = vpop.f32.mrf.mxu0
  %v300 = vadd.f32 0.0, %v299
  %301 = vmatmul.f32.gmra.mxu0 %v94
  %v302 = vpop.f32.mrf.mxu0
  %v303 = vadd.f32 0.0, %v302
  %304 = vmatmul.f32.gmra.mxu0 %v97
  %v305 = vpop.f32.mrf.mxu0
  %v306 = vadd.f32 0.0, %v305
  %307 = vmatmul.f32.gmra.mxu0 %v100
  %v308 = vpop.f32.mrf.mxu0
  %v309 = vadd.f32 0.0, %v308
  %310 = vmatmul.f32.gmra.mxu0 %v103
  %v311 = vpop.f32.mrf.mxu0
  %v312 = vadd.f32 0.0, %v311
  %313 = vmatmul.f32.gmra.mxu0 %v106
  %v314 = vpop.f32.mrf.mxu0
  %v315 = vadd.f32 0.0, %v314
  %316 = vmatmul.f32.gmra.mxu0 %v109
  %v317 = vpop.f32.mrf.mxu0
  %v318 = vadd.f32 0.0, %v317
  %319 = vmatmul.f32.gmra.mxu0 %v112
  %v320 = vpop.f32.mrf.mxu0
  %v321 = vadd.f32 0.0, %v320
  %322 = vmatmul.f32.gmra.mxu0 %v115
  %v323 = vpop.f32.mrf.mxu0
  %v324 = vadd.f32 0.0, %v323
  %325 = vmatmul.f32.gmra.mxu0 %v118
  %v326 = vpop.f32.mrf.mxu0
  %v327 = vadd.f32 0.0, %v326
  %328 = vmatmul.f32.gmra.mxu0 %v121
  %v329 = vpop.f32.mrf.mxu0
  %v330 = vadd.f32 0.0, %v329
  %331 = vmatmul.f32.gmra.mxu0 %v124
  %v332 = vpop.f32.mrf.mxu0
  %v333 = vadd.f32 0.0, %v332
  %334 = vmatmul.f32.gmra.mxu0 %v127
  %v335 = vpop.f32.mrf.mxu0
  %v336 = vadd.f32 0.0, %v335
  %337 = vmatmul.f32.gmra.mxu0 %v130
  %v338 = vpop.f32.mrf.mxu0
  %v339 = vadd.f32 0.0, %v338
  %340 = vmatmul.f32.gmra.mxu0 %v133
  %v341 = vpop.f32.mrf.mxu0
  %v342 = vadd.f32 0.0, %v341
  %343 = vmatmul.f32.gmra.mxu0 %v136
  %v344 = vpop.f32.mrf.mxu0
  %v345 = vadd.f32 0.0, %v344
  %346 = vmatmul.f32.gmra.mxu0 %v139
  %v347 = vpop.f32.mrf.mxu0
  %v348 = vadd.f32 0.0, %v347
  %349 = vmatmul.f32.gmra.mxu0 %v142
  %v350 = vpop.f32.mrf.mxu0
  %v351 = vadd.f32 0.0, %v350
  %352 = vmatmul.f32.gmra.mxu0 %v145
  %v353 = vpop.f32.mrf.mxu0
  %v354 = vadd.f32 0.0, %v353
  %355 = vmatmul.f32.gmra.mxu0 %v148
  %v356 = vpop.f32.mrf.mxu0
  %v357 = vadd.f32 0.0, %v356
  %358 = vmatmul.f32.gmra.mxu0 %v151
  %v359 = vpop.f32.mrf.mxu0
  %v360 = vadd.f32 0.0, %v359
  %361 = vmatmul.f32.gmra.mxu0 %v154
  %v362 = vpop.f32.mrf.mxu0
  %v363 = vadd.f32 0.0, %v362
  %364 = vmatmul.f32.gmra.mxu0 %v157
  %v365 = vpop.f32.mrf.mxu0
  %v366 = vadd.f32 0.0, %v365
  %367 = vmatmul.f32.gmra.mxu0 %v160
  %v368 = vpop.f32.mrf.mxu0
  %v369 = vadd.f32 0.0, %v368
  %370 = vmatmul.f32.gmra.mxu0 %v163
  %v371 = vpop.f32.mrf.mxu0
  %v372 = vadd.f32 0.0, %v371
  %373 = vmatmul.f32.gmra.mxu0 %v166
  %v374 = vpop.f32.mrf.mxu0
  %v375 = vadd.f32 0.0, %v374
  %376 = vmatmul.f32.gmra.mxu0 %v169
  %v377 = vpop.f32.mrf.mxu0
  %v378 = vadd.f32 0.0, %v377
  %379 = vmatmul.f32.gmra.mxu0 %v172
  %v380 = vpop.f32.mrf.mxu0
  %v381 = vadd.f32 0.0, %v380
  %382 = vmatmul.f32.gmra.mxu0 %v175
  %v383 = vpop.f32.mrf.mxu0
  %v384 = vadd.f32 0.0, %v383
  %385 = vmatmul.f32.gmra.mxu0 %v178
  %v386 = vpop.f32.mrf.mxu0
  %v387 = vadd.f32 0.0, %v386
  %388 = vmatmul.f32.gmra.mxu0 %v181
  %v389 = vpop.f32.mrf.mxu0
  %v390 = vadd.f32 0.0, %v389
  %391 = vmatmul.f32.gmra.mxu0 %v184
  %v392 = vpop.f32.mrf.mxu0
  %v393 = vadd.f32 0.0, %v392
  %394 = vmatmul.f32.gmra.mxu0 %v187
  %v395 = vpop.f32.mrf.mxu0
  %v396 = vadd.f32 0.0, %v395
  %397 = vmatmul.f32.gmra.mxu0 %v190
  %v398 = vpop.f32.mrf.mxu0
  %v399 = vadd.f32 0.0, %v398
  %400 = vmatmul.f32.gmra.mxu0 %v193
  %v401 = vpop.f32.mrf.mxu0
  %v402 = vadd.f32 0.0, %v401
  %403 = vmatmul.f32.gmra.mxu0 %v196
  %v404 = vpop.f32.mrf.mxu0
  %v405 = vadd.f32 0.0, %v404
  %406 = vmatmul.f32.gmra.mxu0 %v199
  %v407 = vpop.f32.mrf.mxu0
  %v408 = vadd.f32 0.0, %v407
  %409 = vmatmul.f32.gmra.mxu0 %v202
  %v410 = vpop.f32.mrf.mxu0
  %v411 = vadd.f32 0.0, %v410
  %412 = vmatmul.f32.gmra.mxu0 %v205
  %v413 = vpop.f32.mrf.mxu0
  %v414 = vadd.f32 0.0, %v413
  %415 = vmatmul.f32.gmra.mxu0 %v208
  %v416 = vpop.f32.mrf.mxu0
  %v417 = vadd.f32 0.0, %v416
  %418 = vmatmul.f32.gmra.mxu0 %v211
  %v419 = vpop.f32.mrf.mxu0
  %v420 = vadd.f32 0.0, %v419
  %421 = vmatmul.f32.gmra.mxu0 %v214
  %v422 = vpop.f32.mrf.mxu0
  %v423 = vadd.f32 0.0, %v422
  %424 = vmatmul.f32.gmra.mxu0 %v217
  %v425 = vpop.f32.mrf.mxu0
  %v426 = vadd.f32 0.0, %v425
  %427 = vmatmul.f32.gmra.mxu0 %v220
  %v428 = vpop.f32.mrf.mxu0
  %v429 = vadd.f32 0.0, %v428
  %430 = vmatmul.f32.gmra.mxu0 %v223
  %v431 = vpop.f32.mrf.mxu0
  %v432 = vadd.f32 0.0, %v431
  %433 = vmatmul.f32.gmra.mxu0 %v226
  %v434 = vpop.f32.mrf.mxu0
  %v435 = vadd.f32 0.0, %v434
  %436 = vmatmul.f32.gmra.mxu0 %v229
  %v437 = vpop.f32.mrf.mxu0
  %v438 = vadd.f32 0.0, %v437
  %439 = vmatmul.f32.gmra.mxu0 %v232
  %v440 = vpop.f32.mrf.mxu0
  %v441 = vadd.f32 0.0, %v440
  %442 = vmatmul.f32.gmra.mxu0 %v235
  %v443 = vpop.f32.mrf.mxu0
  %v444 = vadd.f32 0.0, %v443
  %445 = vmatmul.f32.gmra.mxu0 %v238
  %v446 = vpop.f32.mrf.mxu0
  %v447 = vadd.f32 0.0, %v446
  %448 = vmatmul.f32.gmra.mxu0 %v241
  %v449 = vpop.f32.mrf.mxu0
  %v450 = vadd.f32 0.0, %v449
  %451 = vmatmul.f32.gmra.mxu0 %v244
  %v452 = vpop.f32.mrf.mxu0
  %v453 = vadd.f32 0.0, %v452
  %454 = vmatmul.f32.gmra.mxu0 %v247
  %v455 = vpop.f32.mrf.mxu0
  %v456 = vadd.f32 0.0, %v455
  %457 = vmatmul.f32.gmra.mxu0 %v250
  %v458 = vpop.f32.mrf.mxu0
  %v459 = vadd.f32 0.0, %v458
  %460 = vmatmul.f32.gmra.mxu0 %v253
  %v461 = vpop.f32.mrf.mxu0
  %v462 = vadd.f32 0.0, %v461
  %463 = vmatmul.f32.gmra.mxu0 %v256
  %v464 = vpop.f32.mrf.mxu0
  %v465 = vadd.f32 0.0, %v464
  %466 = vmatmul.f32.gmra.mxu0 %v259
  %v467 = vpop.f32.mrf.mxu0
  %v468 = vadd.f32 0.0, %v467
  %469 = vmatmul.f32.gmra.mxu0 %v262
  %v470 = vpop.f32.mrf.mxu0
  %v471 = vadd.f32 0.0, %v470
  %472 = vmatmul.f32.gmra.mxu0 %v265
  %v473 = vpop.f32.mrf.mxu0
  %v474 = vadd.f32 0.0, %v473
  %475 = vmatmul.f32.gmra.mxu0 %v268
  %v476 = vpop.f32.mrf.mxu0
  %v477 = vadd.f32 0.0, %v476
  %478 = vdwg.mxu0
  %479 = vst.msk [vmem:[%s2] sm:$0xff] %vm77, %v288
  %480 = vst.msk [vmem:[%s2 + $0x8] sm:$0xff] %vm77, %v291
  %481 = vst.msk [vmem:[%s2 + $0x10] sm:$0xff] %vm77, %v294
  %482 = vst.msk [vmem:[%s2 + $0x18] sm:$0xff] %vm77, %v297
  %483 = vst.msk [vmem:[%s2 + $0x20] sm:$0xff] %vm77, %v300
  %484 = vst.msk [vmem:[%s2 + $0x28] sm:$0xff] %vm77, %v303
  %485 = vst.msk [vmem:[%s2 + $0x30] sm:$0xff] %vm77, %v306
  %486 = vst.msk [vmem:[%s2 + $0x38] sm:$0xff] %vm77, %v309
  %487 = vst.msk [vmem:[%s2 + $0x40] sm:$0xff] %vm77, %v312
  %488 = vst.msk [vmem:[%s2 + $0x48] sm:$0xff] %vm77, %v315
  %489 = vst.msk [vmem:[%s2 + $0x50] sm:$0xff] %vm77, %v318
  %490 = vst.msk [vmem:[%s2 + $0x58] sm:$0xff] %vm77, %v321
  %491 = vst.msk [vmem:[%s2 + $0x60] sm:$0xff] %vm77, %v324
  %492 = vst.msk [vmem:[%s2 + $0x68] sm:$0xff] %vm77, %v327
  %493 = vst.msk [vmem:[%s2 + $0x70] sm:$0xff] %vm77, %v330
  %494 = vst.msk [vmem:[%s2 + $0x78] sm:$0xff] %vm77, %v333
  %495 = vst.msk [vmem:[%s2 + $0x80] sm:$0xff] %vm77, %v336
  %496 = vst.msk [vmem:[%s2 + $0x88] sm:$0xff] %vm77, %v339
  %497 = vst.msk [vmem:[%s2 + $0x90] sm:$0xff] %vm77, %v342
  %498 = vst.msk [vmem:[%s2 + $0x98] sm:$0xff] %vm77, %v345
  %499 = vst.msk [vmem:[%s2 + $0xa0] sm:$0xff] %vm77, %v348
  %500 = vst.msk [vmem:[%s2 + $0xa8] sm:$0xff] %vm77, %v351
  %501 = vst.msk [vmem:[%s2 + $0xb0] sm:$0xff] %vm77, %v354
  %502 = vst.msk [vmem:[%s2 + $0xb8] sm:$0xff] %vm77, %v357
  %503 = vst.msk [vmem:[%s2 + $0xc0] sm:$0xff] %vm77, %v360
  %504 = vst.msk [vmem:[%s2 + $0xc8] sm:$0xff] %vm77, %v363
  %505 = vst.msk [vmem:[%s2 + $0xd0] sm:$0xff] %vm77, %v366
  %506 = vst.msk [vmem:[%s2 + $0xd8] sm:$0xff] %vm77, %v369
  %507 = vst.msk [vmem:[%s2 + $0xe0] sm:$0xff] %vm77, %v372
  %508 = vst.msk [vmem:[%s2 + $0xe8] sm:$0xff] %vm77, %v375
  %509 = vst.msk [vmem:[%s2 + $0xf0] sm:$0xff] %vm77, %v378
  %510 = vst.msk [vmem:[%s2 + $0xf8] sm:$0xff] %vm77, %v381
  %511 = vst.msk [vmem:[%s2 + $0x100] sm:$0xff] %vm77, %v384
  %512 = vst.msk [vmem:[%s2 + $0x108] sm:$0xff] %vm77, %v387
  %513 = vst.msk [vmem:[%s2 + $0x110] sm:$0xff] %vm77, %v390
  %514 = vst.msk [vmem:[%s2 + $0x118] sm:$0xff] %vm77, %v393
  %515 = vst.msk [vmem:[%s2 + $0x120] sm:$0xff] %vm77, %v396
  %516 = vst.msk [vmem:[%s2 + $0x128] sm:$0xff] %vm77, %v399
  %517 = vst.msk [vmem:[%s2 + $0x130] sm:$0xff] %vm77, %v402
  %518 = vst.msk [vmem:[%s2 + $0x138] sm:$0xff] %vm77, %v405
  %519 = vst.msk [vmem:[%s2 + $0x140] sm:$0xff] %vm77, %v408
  %520 = vst.msk [vmem:[%s2 + $0x148] sm:$0xff] %vm77, %v411
  %521 = vst.msk [vmem:[%s2 + $0x150] sm:$0xff] %vm77, %v414
  %522 = vst.msk [vmem:[%s2 + $0x158] sm:$0xff] %vm77, %v417
  %523 = vst.msk [vmem:[%s2 + $0x160] sm:$0xff] %vm77, %v420
  %524 = vst.msk [vmem:[%s2 + $0x168] sm:$0xff] %vm77, %v423
  %525 = vst.msk [vmem:[%s2 + $0x170] sm:$0xff] %vm77, %v426
  %526 = vst.msk [vmem:[%s2 + $0x178] sm:$0xff] %vm77, %v429
  %527 = vst.msk [vmem:[%s2 + $0x180] sm:$0xff] %vm77, %v432
  %528 = vst.msk [vmem:[%s2 + $0x188] sm:$0xff] %vm77, %v435
  %529 = vst.msk [vmem:[%s2 + $0x190] sm:$0xff] %vm77, %v438
  %530 = vst.msk [vmem:[%s2 + $0x198] sm:$0xff] %vm77, %v441
  %531 = vst.msk [vmem:[%s2 + $0x1a0] sm:$0xff] %vm77, %v444
  %532 = vst.msk [vmem:[%s2 + $0x1a8] sm:$0xff] %vm77, %v447
  %533 = vst.msk [vmem:[%s2 + $0x1b0] sm:$0xff] %vm77, %v450
  %534 = vst.msk [vmem:[%s2 + $0x1b8] sm:$0xff] %vm77, %v453
  %535 = vst.msk [vmem:[%s2 + $0x1c0] sm:$0xff] %vm77, %v456
  %536 = vst.msk [vmem:[%s2 + $0x1c8] sm:$0xff] %vm77, %v459
  %537 = vst.msk [vmem:[%s2 + $0x1d0] sm:$0xff] %vm77, %v462
  %538 = vst.msk [vmem:[%s2 + $0x1d8] sm:$0xff] %vm77, %v465
  %539 = vst.msk [vmem:[%s2 + $0x1e0] sm:$0xff] %vm77, %v468
  %540 = vst.msk [vmem:[%s2 + $0x1e8] sm:$0xff] %vm77, %v471
  %541 = vst.msk [vmem:[%s2 + $0x1f0] sm:$0xff] %vm77, %v474
  %542 = vst.msk [vmem:[%s2 + $0x1f8] sm:$0xff] %vm77, %v477
  // Predicated region
  $region10: #{out_region_conv_forward.2} parent=0 // pred_check
    _
  $region11: #{out_region_conv_forward.2} parent=0 // pred_check_branch
    %544 = sbr.rel (0) target = $region13
  $region12: #{out_region_conv_forward.2} parent=0 // pred_region
    _
  $region13: #{out_region_conv_forward.2} parent=0 // pred_fallthru
    _
  // Predicated region
  $region14: #{out_region_conv_forward.2} parent=0 // pred_check
    _
  $region15: #{out_region_conv_forward.2} parent=0 // pred_check_branch
    %546 = sbr.rel (0) target = $region17
  $region16: #{out_region_conv_forward.2} parent=0 // pred_region
    _
  $region17: #{out_region_conv_forward.2} parent=0 // pred_fallthru
    _

</llo_original>
